<compile_context>
chip_gen: v7x
topology: tpu7x:2x2x1
jax: 0.10.0
libtpu: 0.0.40
codegen_flags: <defaults>
</compile_context>

<pallas_src>
import jax
import jax.numpy as jnp
import numpy as np
from jax.experimental import pallas as pl
from jax.experimental.pallas import tpu as pltpu


# --------------------------------------------------------------------------
# Pallas kernel: per-batch-tile hot path (batch on lanes)
# --------------------------------------------------------------------------
def _mass_matrix_kernel(q_ref, a_ref, c_ref, out_ref):
    # q_ref  : (Q, TB)     VMEM  joint angles, batch on the lane dim
    # a_ref  : (Q*Q, 1)    VMEM  cos-term coefficients, row-major over (i, j)
    # c_ref  : (Q*Q, 1)    VMEM  constant (inertia + diagonal) terms
    # out_ref: (Q*Q, TB)   VMEM  flattened mass matrix, batch on the lane dim
    Q = q_ref.shape[0]

    # Cumulative angles csum_k = q_0 + ... + q_k (Q is static -> unrolled).
    csum = [q_ref[pl.ds(0, 1), :].astype(jnp.float32)]
    for k in range(1, Q):
        csum.append(csum[-1] + q_ref[pl.ds(k, 1), :].astype(jnp.float32))

    # 2*Q transcendentals per batch column instead of Q^2 cosines (EUP slot).
    cos_r = [jnp.cos(r) for r in csum]
    sin_r = [jnp.sin(r) for r in csum]

    # cos(csum_i - csum_j) = cos_i*cos_j + sin_i*sin_j, computed once per
    # unordered pair (the matrix is symmetric).  Diagonal entries use the
    # exact value cos(0) = 1 (their cos-coefficient A[i,i] is 0 anyway).
    ones = jnp.ones_like(cos_r[0])
    rows = [None] * (Q * Q)
    for i in range(Q):
        rows[i * Q + i] = ones
        for j in range(i + 1, Q):
            d = cos_r[i] * cos_r[j] + sin_r[i] * sin_r[j]   # (1, TB)
            rows[i * Q + j] = d
            rows[j * Q + i] = d

    # Dense tail: pack into (Q*Q, TB), one scale, one bias (lane-broadcast
    # from the (Q*Q, 1) coefficient columns), one full unmasked store.
    cosdiff = jnp.concatenate(rows, axis=0)                  # (Q*Q, TB)
    out = a_ref[...] * cosdiff + c_ref[...]
    out_ref[...] = out.astype(out_ref.dtype)


# --------------------------------------------------------------------------
# Parameter -> coefficient glue (batch independent, plain JAX)
# --------------------------------------------------------------------------
def _build_coefficients(params, qdim):
    ms = params[:qdim]
    ls = params[qdim:2 * qdim]
    # g = params[2*qdim]  # unused by forward() (matches the PyTorch module)
    Is = (1.0 / 12.0) * ms * ls ** 2

    # suffix sums: msum_ge[l] = sum_{k>=l} ms[k], isum_ge[l] = sum_{k>=l} Is[k]
    msum_ge = jnp.cumsum(ms[::-1])[::-1]
    isum_ge = jnp.cumsum(Is[::-1])[::-1]

    ii = jnp.arange(qdim)[:, None]
    jj = jnp.arange(qdim)[None, :]
    lmax = jnp.maximum(ii, jj)

    # off-diagonal cos coefficient:
    #   ls[i]*ls[j] * (sum_{k>max(i,j)} ms[k] + 0.5*ms[max(i,j)])
    a_off = ls[ii] * ls[jj] * (msum_ge[lmax] - 0.5 * ms[lmax])
    A = jnp.where(ii == jj, 0.0, a_off)

    # constant term:
    #   diag : ls[i]^2*(sum_{k>i} ms[k] + 0.25*ms[i]) + sum_{k>=i} Is[k]
    #   off  : sum_{k>=max(i,j)} Is[k]
    c_diag = ls[ii] ** 2 * (msum_ge[lmax] - 0.75 * ms[lmax]) + isum_ge[lmax]
    c_off = isum_ge[lmax]
    C = jnp.where(ii == jj, c_diag, c_off)

    n = qdim * qdim
    return (A.reshape(n, 1).astype(jnp.float32),
            C.reshape(n, 1).astype(jnp.float32))


# --------------------------------------------------------------------------
# Wrapper
# --------------------------------------------------------------------------
def multi_link_acrobot_mm(q, params, *, batch_tile=None):
    B, qdim = q.shape
    n = qdim * qdim
    A, C = _build_coefficients(params, qdim)

    if batch_tile is None:
        # Large tiles amortize the ~0.35 us per-grid-step overhead while
        # keeping >= 2 grid steps so v7x can shard the "parallel" axis
        # across both TensorCores.  VMEM use stays tiny (< 1 MiB) even at
        # the cap, so this fits every generation.
        batch_tile = max(128, min(2048, pl.next_power_of_2(pl.cdiv(B, 2))))
    assert batch_tile % 128 == 0, "batch_tile must be a multiple of 128"

    n_tiles = pl.cdiv(B, batch_tile)
    padded_b = n_tiles * batch_tile

    # Lane-dense layout: batch on the last (lane) dimension.
    qT = jnp.transpose(q)                       # (Q, B)
    if padded_b != B:
        qT = jnp.pad(qT, ((0, 0), (0, padded_b - B)))

    out_flat = pl.pallas_call(
        _mass_matrix_kernel,
        out_shape=jax.ShapeDtypeStruct((n, padded_b), q.dtype),
        grid_spec=pltpu.PrefetchScalarGridSpec(
            num_scalar_prefetch=0,
            grid=(n_tiles,),
            in_specs=[
                pl.BlockSpec((qdim, batch_tile), lambda b: (0, b)),
                pl.BlockSpec((n, 1), lambda b: (0, 0)),   # A coefficients
                pl.BlockSpec((n, 1), lambda b: (0, 0)),   # C coefficients
            ],
            out_specs=pl.BlockSpec((n, batch_tile), lambda b: (0, b)),
        ),
        compiler_params=pltpu.CompilerParams(
            dimension_semantics=("parallel",)),
    )(qT, A, C)

    # (Q*Q, B) -> (B, Q, Q).  Consumers that accept the transposed layout can
    # read out_flat directly and skip this transpose.
    return jnp.transpose(out_flat[:, :B]).reshape(B, qdim, qdim)


# --------------------------------------------------------------------------
# Pure-JAX reference (mirrors the PyTorch triple loop)
# --------------------------------------------------------------------------
def _reference_forward(q, params, qdim):
    B = q.shape[0]
    ms = params[:qdim]
    ls = params[qdim:2 * qdim]
    Is = (1.0 / 12.0) * ms * ls ** 2
    M = jnp.zeros((B, qdim, qdim), q.dtype)
    for k in range(qdim):
        for i in range(qdim):
            for j in range(qdim):
                if i > k or j > k:
                    continue
                if i == j:
                    Mij = ls[i] ** 2 * jnp.ones_like(q[:, 0])
                    if i == k:
                        Mij = Mij / 4.0
                else:
                    s, l = min(i, j), max(i, j)
                    cosangbet = jnp.cos(q[:, s + 1:l + 1].sum(axis=1))
                    Mij = ls[i] * ls[j] * cosangbet
                    if i == k or j == k:
                        Mij = Mij / 2.0
                M = M.at[:, i, j].add(ms[k] * Mij + Is[k])
    return M


if __name__ == "__main__":
    qdim = 4
    B = 300   # deliberately not a multiple of 128: exercises the padded tile

    key = jax.random.PRNGKey(0)
    kp, kq = jax.random.split(key)
    # params = |N(0,1)| of shape (2*qdim + 1,) -- masses, lengths, gravity
    params = jnp.abs(jax.random.normal(kp, (2 * qdim + 1,), dtype=jnp.float32))
    q = jax.random.normal(kq, (B, qdim), dtype=jnp.float32)

    out = jax.block_until_ready(multi_link_acrobot_mm(q, params))

    ref = _reference_forward(q, params, qdim)
    np.testing.assert_allclose(np.asarray(out), np.asarray(ref),
                               rtol=1e-5, atol=2e-5)

    print("KERNEL_OK")
</pallas_src>

<mosaic_0001>
module attributes {stable_mosaic.version = 11 : i64} {
  func.func @_mass_matrix_kernel(%arg0: i32, %arg1: memref<4x256xf32, #tpu.memory_space<vmem>>, %arg2: memref<16x1xf32, #tpu.memory_space<vmem>>, %arg3: memref<16x1xf32, #tpu.memory_space<vmem>>, %arg4: memref<16x256xf32, #tpu.memory_space<vmem>>) attributes {dimension_semantics = [#tpu.dimension_semantics<parallel>], iteration_bounds = array<i64: 2>, scalar_prefetch = 0 : i64, scratch_operands = 0 : i64, tpu.core_type = #tpu.core_type<tc>, window_params = [{transform_indices = @transform_0, window_bounds = array<i64: 4, 256>}, {pipeline_mode = #tpu.pipeline_mode<synchronous>, transform_indices = @transform_1, window_bounds = array<i64: 16, 1>}, {pipeline_mode = #tpu.pipeline_mode<synchronous>, transform_indices = @transform_2, window_bounds = array<i64: 16, 1>}, {transform_indices = @transform_3, window_bounds = array<i64: 16, 256>}]} {
    %c0 = arith.constant 0 : index
    %c0_0 = arith.constant 0 : index
    %0 = vector.load %arg1[%c0, %c0_0] : memref<4x256xf32, #tpu.memory_space<vmem>>, vector<1x256xf32>
    %c1 = arith.constant 1 : index
    %c0_1 = arith.constant 0 : index
    %1 = vector.load %arg1[%c1, %c0_1] : memref<4x256xf32, #tpu.memory_space<vmem>>, vector<1x256xf32>
    %2 = arith.addf %0, %1 : vector<1x256xf32>
    %c2 = arith.constant 2 : index
    %c0_2 = arith.constant 0 : index
    %3 = vector.load %arg1[%c2, %c0_2] : memref<4x256xf32, #tpu.memory_space<vmem>>, vector<1x256xf32>
    %4 = arith.addf %2, %3 : vector<1x256xf32>
    %c3 = arith.constant 3 : index
    %c0_3 = arith.constant 0 : index
    %5 = vector.load %arg1[%c3, %c0_3] : memref<4x256xf32, #tpu.memory_space<vmem>>, vector<1x256xf32>
    %6 = arith.addf %4, %5 : vector<1x256xf32>
    %7 = math.cos %0 : vector<1x256xf32>
    %8 = math.cos %2 : vector<1x256xf32>
    %9 = math.cos %4 : vector<1x256xf32>
    %10 = math.cos %6 : vector<1x256xf32>
    %11 = math.sin %0 : vector<1x256xf32>
    %12 = math.sin %2 : vector<1x256xf32>
    %13 = math.sin %4 : vector<1x256xf32>
    %14 = math.sin %6 : vector<1x256xf32>
    %cst = arith.constant 1.000000e+00 : f32
    %15 = vector.broadcast %cst : f32 to vector<1x256xf32>
    %16 = arith.mulf %7, %8 : vector<1x256xf32>
    %17 = arith.mulf %11, %12 : vector<1x256xf32>
    %18 = arith.addf %16, %17 : vector<1x256xf32>
    %19 = arith.mulf %7, %9 : vector<1x256xf32>
    %20 = arith.mulf %11, %13 : vector<1x256xf32>
    %21 = arith.addf %19, %20 : vector<1x256xf32>
    %22 = arith.mulf %7, %10 : vector<1x256xf32>
    %23 = arith.mulf %11, %14 : vector<1x256xf32>
    %24 = arith.addf %22, %23 : vector<1x256xf32>
    %25 = arith.mulf %8, %9 : vector<1x256xf32>
    %26 = arith.mulf %12, %13 : vector<1x256xf32>
    %27 = arith.addf %25, %26 : vector<1x256xf32>
    %28 = arith.mulf %8, %10 : vector<1x256xf32>
    %29 = arith.mulf %12, %14 : vector<1x256xf32>
    %30 = arith.addf %28, %29 : vector<1x256xf32>
    %31 = arith.mulf %9, %10 : vector<1x256xf32>
    %32 = arith.mulf %13, %14 : vector<1x256xf32>
    %33 = arith.addf %31, %32 : vector<1x256xf32>
    %34 = tpu.concatenate %15, %18, %21, %24, %18, %15, %27, %30, %21, %27, %15, %33, %24, %30, %33, %15 in 0 : vector<1x256xf32>, vector<1x256xf32>, vector<1x256xf32>, vector<1x256xf32>, vector<1x256xf32>, vector<1x256xf32>, vector<1x256xf32>, vector<1x256xf32>, vector<1x256xf32>, vector<1x256xf32>, vector<1x256xf32>, vector<1x256xf32>, vector<1x256xf32>, vector<1x256xf32>, vector<1x256xf32>, vector<1x256xf32> -> vector<16x256xf32>
    %c0_4 = arith.constant 0 : index
    %c0_5 = arith.constant 0 : index
    %35 = vector.load %arg2[%c0_4, %c0_5] : memref<16x1xf32, #tpu.memory_space<vmem>>, vector<16x1xf32>
    %36 = vector.broadcast %35 : vector<16x1xf32> to vector<16x256xf32>
    %37 = arith.mulf %36, %34 : vector<16x256xf32>
    %c0_6 = arith.constant 0 : index
    %c0_7 = arith.constant 0 : index
    %38 = vector.load %arg3[%c0_6, %c0_7] : memref<16x1xf32, #tpu.memory_space<vmem>>, vector<16x1xf32>
    %39 = vector.broadcast %38 : vector<16x1xf32> to vector<16x256xf32>
    %40 = arith.addf %37, %39 : vector<16x256xf32>
    %c0_8 = arith.constant 0 : index
    %c0_9 = arith.constant 0 : index
    %41 = vector.load %arg4[%c0_8, %c0_9] : memref<16x256xf32, #tpu.memory_space<vmem>>, vector<16x256xf32>
    tpu.vector_store %arg4[%c0_8, %c0_9], %40 {strides = array<i32>} : memref<16x256xf32, #tpu.memory_space<vmem>>, vector<16x256xf32>,
    return
  }
  func.func @transform_0(%arg0: i32) -> (i32, i32) {
    %c0_i32 = arith.constant 0 : i32
    %c0_i32_0 = arith.constant 0 : i32
    return %c0_i32, %arg0 : i32, i32
  }
  func.func @transform_1(%arg0: i32) -> (i32, i32) {
    %c0_i32 = arith.constant 0 : i32
    %c0_i32_0 = arith.constant 0 : i32
    %c0_i32_1 = arith.constant 0 : i32
    return %c0_i32, %c0_i32_0 : i32, i32
  }
  func.func @transform_2(%arg0: i32) -> (i32, i32) {
    %c0_i32 = arith.constant 0 : i32
    %c0_i32_0 = arith.constant 0 : i32
    %c0_i32_1 = arith.constant 0 : i32
    return %c0_i32, %c0_i32_0 : i32, i32
  }
  func.func @transform_3(%arg0: i32) -> (i32, i32) {
    %c0_i32 = arith.constant 0 : i32
    %c0_i32_0 = arith.constant 0 : i32
    return %c0_i32, %arg0 : i32, i32
  }
}

</mosaic_0001>

<llo_original>
// kernel: tpu_custom_call.1
$region0: #{tpu_custom_call.1}
  #allocation0 [shape = 'u32[]', space=smem, size = 0x4, offset = 0x4, fixed_abs, tag = 'smem constant byte address 0x4 - core index']
  #allocation1 [shape = 'u32[144,128]{1,0:T(1,128)}', space=vmem, size = 0x12000, scoped, tag = 'internal scratch']
  %s0 = inlined_call_operand.vmem [shape: f32[4,512], index: 0, kind: input, shape index: {}]
  %s1 = inlined_call_operand.vmem [shape: f32[16,1], index: 1, kind: input, shape index: {}]
  %s2 = inlined_call_operand.vmem [shape: f32[16,1], index: 2, kind: input, shape index: {}]
  %s3 = inlined_call_operand.hbm [shape: f32[16,512], index: 3, kind: output, shape index: {}]
  %s4 = sld [smem:[#allocation0]]
  $region45: #{tpu_custom_call.1} parent=0
    _
  %s6 = ssub.s32 1, %s4
  %s7 = scalar_select 0, %s6, %s4
  $region1: #{tpu_custom_call.1} parent=0
    #allocation2 [shape = 'u8[32768]{0}', space=vmem, size = 0x8000, scoped, tag = 'output window, operand 0']
    #allocation3 [shape = 's32[2]{0}', space=sflag, size = 0x8, scoped, tag = 'scoped memory for tpu_custom_call.1']
    %8 = vsyncpa [#allocation3], 0
    %s9 = scalar_lea.sflag [#allocation3], 1
    %10 = vsyncpa %s9, 0
    loop: start=0, step=1, limit=4
    $region2: #{tpu_custom_call.1} parent=1 // loop_pre_header
      _
    $region3: #{tpu_custom_call.1} parent=1 // loop_header
      %s12 = sphi 0, %s16
      %p13 = scmp.ge.s32.totalorder %s12, 4
      %s22 = sphi 0, %s24
      %s25 = sphi 0, %s22
      %s26 = sphi 0, %s25
      %s42 = sphi 0, %s26
      %s46 = sphi 0, %s46
      %s48 = sphi 0, %s46
      %s49 = sphi 0, %s48
      %s63 = sphi 0, %s49
      %s67 = sphi 0, %s67
      %s69 = sphi 0, %s67
      %s70 = sphi 0, %s69
      %s84 = sphi 0, %s70
      %s90 = sphi 0, %s92
      %s93 = sphi 0, %s90
      %s94 = sphi 0, %s93
      %s110 = sphi 0, %s94
    $region4: #{tpu_custom_call.1} parent=1 // loop_header_branch
      %15 = sbr.rel (%p13) target = $region8
    $region5: #{tpu_custom_call.1} parent=1 // loop_body
      %s17 = ssub.s32 %s12, 1
      %s18 = ssub.s32 %s12, 2
      %s19 = sadd.s32 %s12, 1
      %s20 = ssub.s32 %s12, %s19
      %p21 = scmp.eq.s32.totalorder %s20, 0
      %s23 = sadd.s32 %s22, 1
      %s24 = scalar_select %p21, %s22, %s23
      %p27 = pneg %p21
      %p28 = scmp.eq.s32.totalorder %s12, 1
      %p29 = por %p27, %p28
      %p30 = scmp.ne.s32.totalorder %s22, %s25
      %p31 = scmp.eq.s32.totalorder %s12, 0
      %p32 = por %p30, %p31
      %p33 = scmp.ne.s32.totalorder %s22, %s25
      %p34 = scmp.eq.s32.totalorder %s17, 1
      %p35 = por %p33, %p34
      %p36 = scmp.ne.s32.totalorder %s25, %s26
      %p37 = scmp.eq.s32.totalorder %s17, 0
      %p38 = por %p36, %p37
      %p39 = scmp.ne.s32.totalorder %s25, %s26
      %p40 = scmp.eq.s32.totalorder %s18, 1
      %p41 = por %p39, %p40
      %p43 = scmp.ne.s32.totalorder %s26, %s42
      %p44 = scmp.eq.s32.totalorder %s18, 0
      %p45 = por %p43, %p44
      %s47 = sadd.s32 %s46, 1
      %p50 = scmp.eq.s32.totalorder %s12, 1
      %p51 = scmp.ne.s32.totalorder %s46, %s48
      %p52 = scmp.eq.s32.totalorder %s12, 0
      %p53 = por %p51, %p52
      %p54 = scmp.ne.s32.totalorder %s46, %s48
      %p55 = scmp.eq.s32.totalorder %s17, 1
      %p56 = por %p54, %p55
      %p57 = scmp.ne.s32.totalorder %s48, %s49
      %p58 = scmp.eq.s32.totalorder %s17, 0
      %p59 = por %p57, %p58
      %p60 = scmp.ne.s32.totalorder %s48, %s49
      %p61 = scmp.eq.s32.totalorder %s18, 1
      %p62 = por %p60, %p61
      %p64 = scmp.ne.s32.totalorder %s49, %s63
      %p65 = scmp.eq.s32.totalorder %s18, 0
      %p66 = por %p64, %p65
      %s68 = sadd.s32 %s67, 1
      %p71 = scmp.eq.s32.totalorder %s12, 1
      %p72 = scmp.ne.s32.totalorder %s67, %s69
      %p73 = scmp.eq.s32.totalorder %s12, 0
      %p74 = por %p72, %p73
      %p75 = scmp.ne.s32.totalorder %s67, %s69
      %p76 = scmp.eq.s32.totalorder %s17, 1
      %p77 = por %p75, %p76
      %p78 = scmp.ne.s32.totalorder %s69, %s70
      %p79 = scmp.eq.s32.totalorder %s17, 0
      %p80 = por %p78, %p79
      %p81 = scmp.ne.s32.totalorder %s69, %s70
      %p82 = scmp.eq.s32.totalorder %s18, 1
      %p83 = por %p81, %p82
      %p85 = scmp.ne.s32.totalorder %s70, %s84
      %p86 = scmp.eq.s32.totalorder %s18, 0
      %p87 = por %p85, %p86
      %s88 = ssub.s32 %s12, %s19
      %p89 = scmp.eq.s32.totalorder %s88, 0
      %s91 = sadd.s32 %s90, 1
      %s92 = scalar_select %p89, %s90, %s91
      %p95 = pneg %p89
      %p96 = scmp.eq.s32.totalorder %s12, 1
      %p97 = por %p95, %p96
      %p98 = scmp.ne.s32.totalorder %s90, %s93
      %p99 = scmp.eq.s32.totalorder %s12, 0
      %p100 = por %p98, %p99
      %p101 = scmp.ne.s32.totalorder %s90, %s93
      %p102 = scmp.eq.s32.totalorder %s17, 1
      %p103 = por %p101, %p102
      %p104 = scmp.ne.s32.totalorder %s93, %s94
      %p105 = scmp.eq.s32.totalorder %s17, 0
      %p106 = por %p104, %p105
      %p107 = scmp.ne.s32.totalorder %s93, %s94
      %p108 = scmp.eq.s32.totalorder %s18, 1
      %p109 = por %p107, %p108
      %p111 = scmp.ne.s32.totalorder %s94, %s110
      %p112 = scmp.eq.s32.totalorder %s18, 0
      %p113 = por %p111, %p112
      %p114 = scmp.le.s32.totalorder 1, %s12
      %p115 = scmp.lt.s32.totalorder %s12, 3
      %p116 = pnand %p114, %p115
      %p117 = pneg %p116
      // Predicated region
      $region9: #{tpu_custom_call.1} parent=5 // pred_check
        _
      $region10: #{tpu_custom_call.1} parent=5 // pred_check_branch
        %119 = sbr.rel (%p116) target = $region12
      $region11: #{tpu_custom_call.1} parent=5 // pred_region
        %s120 = ssub.s32 %s12, 1
        // Predicated region
        $region13: #{tpu_custom_call.1} parent=11 // pred_check
          %p121 = pneg %p59
        $region14: #{tpu_custom_call.1} parent=11 // pred_check_branch
          %123 = sbr.rel (%p121) target = $region16
        $region15: #{tpu_custom_call.1} parent=11 // pred_region
          _
        $region16: #{tpu_custom_call.1} parent=11 // pred_fallthru
          _
        // Predicated region
        $region17: #{tpu_custom_call.1} parent=11 // pred_check
          %p124 = pneg %p80
        $region18: #{tpu_custom_call.1} parent=11 // pred_check_branch
          %126 = sbr.rel (%p124) target = $region20
        $region19: #{tpu_custom_call.1} parent=11 // pred_region
          _
        $region20: #{tpu_custom_call.1} parent=11 // pred_fallthru
          _
      $region12: #{tpu_custom_call.1} parent=5 // pred_fallthru
        _
      %p127 = scmp.lt.s32.totalorder %s12, 2
      // Predicated region
      $region21: #{tpu_custom_call.1} parent=5 // pred_check
        %p128 = pneg %p127
      $region22: #{tpu_custom_call.1} parent=5 // pred_check_branch
        %130 = sbr.rel (%p128) target = $region24
      $region23: #{tpu_custom_call.1} parent=5 // pred_region
        // Predicated region
        $region25: #{tpu_custom_call.1} parent=23 // pred_check
          %p131 = pneg %p32
        $region26: #{tpu_custom_call.1} parent=23 // pred_check_branch
          %133 = sbr.rel (%p131) target = $region28
        $region27: #{tpu_custom_call.1} parent=23 // pred_region
          %s134 = smul.u32 2, %s12
          %p135 = scmp.lt.s32.totalorder %s134, 3
          %s136 = scalar_select %p135, %s134, 3
          %s137 = smul.addr %s136, 4
          %s138 = scalar_lea.vmem %s0, %s137
          %s139 = smul.u32 2, %s12
        $region28: #{tpu_custom_call.1} parent=23 // pred_fallthru
          _
      $region24: #{tpu_custom_call.1} parent=5 // pred_fallthru
        _
      %p140 = scmp.le.s32.totalorder 1, %s12
      %p141 = scmp.lt.s32.totalorder %s12, 3
      %p142 = pnand %p140, %p141
      %p143 = pneg %p142
      // Predicated region
      $region29: #{tpu_custom_call.1} parent=5 // pred_check
        _
      $region30: #{tpu_custom_call.1} parent=5 // pred_check_branch
        %145 = sbr.rel (%p142) target = $region32
      $region31: #{tpu_custom_call.1} parent=5 // pred_region
        %s146 = ssub.s32 %s12, 1
        %s147 = smul.u32 2, %s17
        %p148 = scmp.lt.s32.totalorder %s147, 3
        %s149 = scalar_select %p148, %s147, 3
        %s150 = smul.addr %s149, 4
        %s151 = scalar_lea.vmem %s0, %s150
        %p152 = pneg %p38
        %p153 = pneg %p35
        %p154 = pneg %p59
        %p155 = pneg %p56
        %p156 = pneg %p80
        %p157 = pneg %p77
        %p158 = pneg %p106
        %p159 = pneg %p103
        %s160 = sand.u32 %s93, 1
        %s161 = scalar_lea.sflag [#allocation3], %s160
        %s162 = sand.u32 %s93, 1
        %s163 = smul.addr %s162, 32
        %s164 = scalar_lea.vmem [#allocation2], %s163
        %s165 = smul.u32 2, %s17
        %p166 = scmp.lt.s32.totalorder %s165, 3
        %s167 = scalar_select %p166, %s165, 3
        %s168 = smul.addr %s167, 4
        %s169 = scalar_lea.vmem %s0, %s168
        %s170 = smul.u32 2, %s17
        %s171 = smul.u32 2, %s17
        %v172 = vld [vmem:[%s169] ss:$4 sm:$0x3]
        %s173 = scalar_lea.vmem %s169, 1
        %v174 = vld [vmem:[%s173] ss:$4 sm:$0x3]
        %v175 = vadd.f32 %v172, %v174
        %s176 = scalar_lea.vmem %s169, 2
        %v177 = vld [vmem:[%s176] ss:$4 sm:$0x3]
        %v178 = vadd.f32 %v175, %v177
        %s179 = scalar_lea.vmem %s169, 3
        %v180 = vld [vmem:[%s179] ss:$4 sm:$0x3]
        %v181 = vadd.f32 %v178, %v180
        %v182 = vand.u32 2147483647, %v172
        %vm183 = vcmp.le.f32.partialorder %v182, 0.7853982
        %vm184 = vcmp.lt.s32.totalorder %v172, 0
        %v185 = vand.u32 %v172, 2139095040
        %v186 = vshrl.u32 %v185, 23
        %v187 = vsub.s32 %v186, 127
        %v188 = vand.u32 2147483647, %v172
        %v189 = vand.u32 %v188, 8388607
        %v190 = vor.u32 %v189, 8388608
        %v191 = vsub.s32 0, %v190
        %v192 = vadd.s32 %v187, 1
        %vm193 = vcmp.gt.s32.totalorder %v192, 0
        %v194 = vsel %vm193, %v192, 0
        %v195 = vshrl.u32 %v194, 5
        %v196 = vand.u32 %v194, 31
        %v197 = vsub.s32 32, %v196
        %v198 = vshrl.u32 683565275, %v197
        %v199 = vshll.u32 683565275, %v196
        %v200 = vshrl.u32 2475754826, %v197
        %v201 = vor.u32 %v199, %v200
        %v202 = vshll.u32 2475754826, %v196
        %v203 = vshrl.u32 2131351028, %v197
        %v204 = vor.u32 %v202, %v203
        %v205 = vshll.u32 2131351028, %v196
        %v206 = vshrl.u32 2102212464, %v197
        %v207 = vor.u32 %v205, %v206
        %v208 = vshll.u32 2102212464, %v196
        %v209 = vshrl.u32 920167782, %v197
        %v210 = vor.u32 %v208, %v209
        %v211 = vshll.u32 920167782, %v196
        %v212 = vshrl.u32 1326507024, %v197
        %v213 = vor.u32 %v211, %v212
        %vm214 = vcmp.lt.s32.totalorder %v195, 1
        %vm215 = vcmp.lt.s32.totalorder %v195, 2
        %vm216 = vcmp.lt.s32.totalorder %v195, 3
        %vm217 = vcmp.lt.s32.totalorder %v195, 4
        %v218 = vsel %vm214, %v198, %v201
        %v219 = vsel %vm217, %v207, 2102212464
        %v220 = vsel %vm216, %v204, %v219
        %v221 = vsel %vm215, %v218, %v220
        %v222 = vsel %vm214, %v201, %v204
        %v223 = vsel %vm217, %v210, 920167782
        %v224 = vsel %vm216, %v207, %v223
        %v225 = vsel %vm215, %v222, %v224
        %v226 = vsel %vm214, %v204, %v207
        %v227 = vsel %vm217, %v213, 1326507024
        %v228 = vsel %vm216, %v210, %v227
        %v229 = vsel %vm215, %v226, %v228
        %v230 = vshll.u32 %v190, 8
        %v231 = vmul.u32.u64.compose %v230, %v229
        %v232 = vextract.low.u32 %v231
        %v233 = vextract.high.u32 %v231
        %v234 = vmul.u32.u64.compose %v230, %v225
        %v235 = vextract.low.u32 %v234
        %v236 = vextract.high.u32 %v234
        %v237 = vmul.u32 %v230, %v221
        %v238 = vadd.s32 %v233, %v235
        %vm239 = vc.u32 %v233, %v235
        %v240 = vadd.s32 %v236, 1
        %v241 = vsel %vm239, %v240, %v236
        %v242 = vadd.s32 %v237, %v241
        %v243 = vadd.s32 %v242, 536870912
        %v244 = vshrl.u32 %v243, 30
        %v245 = vshll.u32 %v244, 30
        %v246 = vsub.s32 %v242, %v245
        %vm247 = vcmp.lt.s32.totalorder %v246, 0
        %v248 = vsub.s32 0, %v246
        %v249 = vsel %vm247, %v248, %v246
        %v250 = vclz %v249
        %v251 = vsub.s32 %v250, 2
        %vm252 = vcmp.gt.s32.totalorder 0, %v251
        %v253 = vsel %vm252, 0, %v251
        %v254 = vsub.s32 32, %v253
        %v255 = vshll.u32 %v246, %v253
        %v256 = vshrl.u32 %v238, %v254
        %v257 = vor.u32 %v255, %v256
        %v258 = vsub.s32 4294967266, %v253
        %v259 = vadd.s32 %v258, 127
        %v260 = vshll.u32 %v259, 23
        %v261 = vor.u32 4788187, %v260
        %v262 = vand.u32 2147483647, %v261
        %v264 = vcvt.s32.f32 %v257
        %v265 = vmul.f32 %v264, %v262
        %v266 = vxor.u32 %v265, 2147483648
        %v267 = vsel %vm184, %v266, %v265
        %v268 = vsub.s32 4, %v244
        %v269 = vsel %vm184, %v268, %v244
        %v270 = vsel %vm183, %v172, %v267
        %v271 = vsel %vm183, 0, %v269
        %v272 = vcosq.f32.pop %v270
        %v273 = vsinq.f32.pop %v270
        %vm274 = vweird.f32 %v172
        %v275 = vand.u32 %v271, 3
        %vm276 = vcmp.lt.s32.totalorder %v275, 2
        %vm277 = vcmp.eq.s32.totalorder %v275, 0
        %v278 = vxor.u32 %v273, 2147483648
        %v279 = vsel %vm277, %v272, %v278
        %vm280 = vcmp.eq.s32.totalorder %v275, 2
        %v281 = vxor.u32 %v272, 2147483648
        %v282 = vsel %vm280, %v281, %v273
        %v283 = vsel %vm276, %v279, %v282
        %v284 = vsel %vm274, nan, %v283
        %v285 = vand.u32 2147483647, %v175
        %vm286 = vcmp.le.f32.partialorder %v285, 0.7853982
        %vm287 = vcmp.lt.s32.totalorder %v175, 0
        %v288 = vand.u32 %v175, 2139095040
        %v289 = vshrl.u32 %v288, 23
        %v290 = vsub.s32 %v289, 127
        %v291 = vand.u32 2147483647, %v175
        %v292 = vand.u32 %v291, 8388607
        %v293 = vor.u32 %v292, 8388608
        %v294 = vsub.s32 0, %v293
        %v295 = vadd.s32 %v290, 1
        %vm296 = vcmp.gt.s32.totalorder %v295, 0
        %v297 = vsel %vm296, %v295, 0
        %v298 = vshrl.u32 %v297, 5
        %v299 = vand.u32 %v297, 31
        %v300 = vsub.s32 32, %v299
        %v301 = vshrl.u32 683565275, %v300
        %v302 = vshll.u32 683565275, %v299
        %v303 = vshrl.u32 2475754826, %v300
        %v304 = vor.u32 %v302, %v303
        %v305 = vshll.u32 2475754826, %v299
        %v306 = vshrl.u32 2131351028, %v300
        %v307 = vor.u32 %v305, %v306
        %v308 = vshll.u32 2131351028, %v299
        %v309 = vshrl.u32 2102212464, %v300
        %v310 = vor.u32 %v308, %v309
        %v311 = vshll.u32 2102212464, %v299
        %v312 = vshrl.u32 920167782, %v300
        %v313 = vor.u32 %v311, %v312
        %v314 = vshll.u32 920167782, %v299
        %v315 = vshrl.u32 1326507024, %v300
        %v316 = vor.u32 %v314, %v315
        %vm317 = vcmp.lt.s32.totalorder %v298, 1
        %vm318 = vcmp.lt.s32.totalorder %v298, 2
        %vm319 = vcmp.lt.s32.totalorder %v298, 3
        %vm320 = vcmp.lt.s32.totalorder %v298, 4
        %v321 = vsel %vm317, %v301, %v304
        %v322 = vsel %vm320, %v310, 2102212464
        %v323 = vsel %vm319, %v307, %v322
        %v324 = vsel %vm318, %v321, %v323
        %v325 = vsel %vm317, %v304, %v307
        %v326 = vsel %vm320, %v313, 920167782
        %v327 = vsel %vm319, %v310, %v326
        %v328 = vsel %vm318, %v325, %v327
        %v329 = vsel %vm317, %v307, %v310
        %v330 = vsel %vm320, %v316, 1326507024
        %v331 = vsel %vm319, %v313, %v330
        %v332 = vsel %vm318, %v329, %v331
        %v333 = vshll.u32 %v293, 8
        %v334 = vmul.u32.u64.compose %v333, %v332
        %v335 = vextract.low.u32 %v334
        %v336 = vextract.high.u32 %v334
        %v337 = vmul.u32.u64.compose %v333, %v328
        %v338 = vextract.low.u32 %v337
        %v339 = vextract.high.u32 %v337
        %v340 = vmul.u32 %v333, %v324
        %v341 = vadd.s32 %v336, %v338
        %vm342 = vc.u32 %v336, %v338
        %v343 = vadd.s32 %v339, 1
        %v344 = vsel %vm342, %v343, %v339
        %v345 = vadd.s32 %v340, %v344
        %v346 = vadd.s32 %v345, 536870912
        %v347 = vshrl.u32 %v346, 30
        %v348 = vshll.u32 %v347, 30
        %v349 = vsub.s32 %v345, %v348
        %vm350 = vcmp.lt.s32.totalorder %v349, 0
        %v351 = vsub.s32 0, %v349
        %v352 = vsel %vm350, %v351, %v349
        %v353 = vclz %v352
        %v354 = vsub.s32 %v353, 2
        %vm355 = vcmp.gt.s32.totalorder 0, %v354
        %v356 = vsel %vm355, 0, %v354
        %v357 = vsub.s32 32, %v356
        %v358 = vshll.u32 %v349, %v356
        %v359 = vshrl.u32 %v341, %v357
        %v360 = vor.u32 %v358, %v359
        %v361 = vsub.s32 4294967266, %v356
        %v362 = vadd.s32 %v361, 127
        %v363 = vshll.u32 %v362, 23
        %v364 = vor.u32 4788187, %v363
        %v365 = vand.u32 2147483647, %v364
        %v367 = vcvt.s32.f32 %v360
        %v368 = vmul.f32 %v367, %v365
        %v369 = vxor.u32 %v368, 2147483648
        %v370 = vsel %vm287, %v369, %v368
        %v371 = vsub.s32 4, %v347
        %v372 = vsel %vm287, %v371, %v347
        %v373 = vsel %vm286, %v175, %v370
        %v374 = vsel %vm286, 0, %v372
        %v375 = vcosq.f32.pop %v373
        %v376 = vsinq.f32.pop %v373
        %vm377 = vweird.f32 %v175
        %v378 = vand.u32 %v374, 3
        %vm379 = vcmp.lt.s32.totalorder %v378, 2
        %vm380 = vcmp.eq.s32.totalorder %v378, 0
        %v381 = vxor.u32 %v376, 2147483648
        %v382 = vsel %vm380, %v375, %v381
        %vm383 = vcmp.eq.s32.totalorder %v378, 2
        %v384 = vxor.u32 %v375, 2147483648
        %v385 = vsel %vm383, %v384, %v376
        %v386 = vsel %vm379, %v382, %v385
        %v387 = vsel %vm377, nan, %v386
        %v388 = vand.u32 2147483647, %v178
        %vm389 = vcmp.le.f32.partialorder %v388, 0.7853982
        %vm390 = vcmp.lt.s32.totalorder %v178, 0
        %v391 = vand.u32 %v178, 2139095040
        %v392 = vshrl.u32 %v391, 23
        %v393 = vsub.s32 %v392, 127
        %v394 = vand.u32 2147483647, %v178
        %v395 = vand.u32 %v394, 8388607
        %v396 = vor.u32 %v395, 8388608
        %v397 = vsub.s32 0, %v396
        %v398 = vadd.s32 %v393, 1
        %vm399 = vcmp.gt.s32.totalorder %v398, 0
        %v400 = vsel %vm399, %v398, 0
        %v401 = vshrl.u32 %v400, 5
        %v402 = vand.u32 %v400, 31
        %v403 = vsub.s32 32, %v402
        %v404 = vshrl.u32 683565275, %v403
        %v405 = vshll.u32 683565275, %v402
        %v406 = vshrl.u32 2475754826, %v403
        %v407 = vor.u32 %v405, %v406
        %v408 = vshll.u32 2475754826, %v402
        %v409 = vshrl.u32 2131351028, %v403
        %v410 = vor.u32 %v408, %v409
        %v411 = vshll.u32 2131351028, %v402
        %v412 = vshrl.u32 2102212464, %v403
        %v413 = vor.u32 %v411, %v412
        %v414 = vshll.u32 2102212464, %v402
        %v415 = vshrl.u32 920167782, %v403
        %v416 = vor.u32 %v414, %v415
        %v417 = vshll.u32 920167782, %v402
        %v418 = vshrl.u32 1326507024, %v403
        %v419 = vor.u32 %v417, %v418
        %vm420 = vcmp.lt.s32.totalorder %v401, 1
        %vm421 = vcmp.lt.s32.totalorder %v401, 2
        %vm422 = vcmp.lt.s32.totalorder %v401, 3
        %vm423 = vcmp.lt.s32.totalorder %v401, 4
        %v424 = vsel %vm420, %v404, %v407
        %v425 = vsel %vm423, %v413, 2102212464
        %v426 = vsel %vm422, %v410, %v425
        %v427 = vsel %vm421, %v424, %v426
        %v428 = vsel %vm420, %v407, %v410
        %v429 = vsel %vm423, %v416, 920167782
        %v430 = vsel %vm422, %v413, %v429
        %v431 = vsel %vm421, %v428, %v430
        %v432 = vsel %vm420, %v410, %v413
        %v433 = vsel %vm423, %v419, 1326507024
        %v434 = vsel %vm422, %v416, %v433
        %v435 = vsel %vm421, %v432, %v434
        %v436 = vshll.u32 %v396, 8
        %v437 = vmul.u32.u64.compose %v436, %v435
        %v438 = vextract.low.u32 %v437
        %v439 = vextract.high.u32 %v437
        %v440 = vmul.u32.u64.compose %v436, %v431
        %v441 = vextract.low.u32 %v440
        %v442 = vextract.high.u32 %v440
        %v443 = vmul.u32 %v436, %v427
        %v444 = vadd.s32 %v439, %v441
        %vm445 = vc.u32 %v439, %v441
        %v446 = vadd.s32 %v442, 1
        %v447 = vsel %vm445, %v446, %v442
        %v448 = vadd.s32 %v443, %v447
        %v449 = vadd.s32 %v448, 536870912
        %v450 = vshrl.u32 %v449, 30
        %v451 = vshll.u32 %v450, 30
        %v452 = vsub.s32 %v448, %v451
        %vm453 = vcmp.lt.s32.totalorder %v452, 0
        %v454 = vsub.s32 0, %v452
        %v455 = vsel %vm453, %v454, %v452
        %v456 = vclz %v455
        %v457 = vsub.s32 %v456, 2
        %vm458 = vcmp.gt.s32.totalorder 0, %v457
        %v459 = vsel %vm458, 0, %v457
        %v460 = vsub.s32 32, %v459
        %v461 = vshll.u32 %v452, %v459
        %v462 = vshrl.u32 %v444, %v460
        %v463 = vor.u32 %v461, %v462
        %v464 = vsub.s32 4294967266, %v459
        %v465 = vadd.s32 %v464, 127
        %v466 = vshll.u32 %v465, 23
        %v467 = vor.u32 4788187, %v466
        %v468 = vand.u32 2147483647, %v467
        %v470 = vcvt.s32.f32 %v463
        %v471 = vmul.f32 %v470, %v468
        %v472 = vxor.u32 %v471, 2147483648
        %v473 = vsel %vm390, %v472, %v471
        %v474 = vsub.s32 4, %v450
        %v475 = vsel %vm390, %v474, %v450
        %v476 = vsel %vm389, %v178, %v473
        %v477 = vsel %vm389, 0, %v475
        %v478 = vcosq.f32.pop %v476
        %v479 = vsinq.f32.pop %v476
        %vm480 = vweird.f32 %v178
        %v481 = vand.u32 %v477, 3
        %vm482 = vcmp.lt.s32.totalorder %v481, 2
        %vm483 = vcmp.eq.s32.totalorder %v481, 0
        %v484 = vxor.u32 %v479, 2147483648
        %v485 = vsel %vm483, %v478, %v484
        %vm486 = vcmp.eq.s32.totalorder %v481, 2
        %v487 = vxor.u32 %v478, 2147483648
        %v488 = vsel %vm486, %v487, %v479
        %v489 = vsel %vm482, %v485, %v488
        %v490 = vsel %vm480, nan, %v489
        %v491 = vand.u32 2147483647, %v181
        %vm492 = vcmp.le.f32.partialorder %v491, 0.7853982
        %vm493 = vcmp.lt.s32.totalorder %v181, 0
        %v494 = vand.u32 %v181, 2139095040
        %v495 = vshrl.u32 %v494, 23
        %v496 = vsub.s32 %v495, 127
        %v497 = vand.u32 2147483647, %v181
        %v498 = vand.u32 %v497, 8388607
        %v499 = vor.u32 %v498, 8388608
        %v500 = vsub.s32 0, %v499
        %v501 = vadd.s32 %v496, 1
        %vm502 = vcmp.gt.s32.totalorder %v501, 0
        %v503 = vsel %vm502, %v501, 0
        %v504 = vshrl.u32 %v503, 5
        %v505 = vand.u32 %v503, 31
        %v506 = vsub.s32 32, %v505
        %v507 = vshrl.u32 683565275, %v506
        %v508 = vshll.u32 683565275, %v505
        %v509 = vshrl.u32 2475754826, %v506
        %v510 = vor.u32 %v508, %v509
        %v511 = vshll.u32 2475754826, %v505
        %v512 = vshrl.u32 2131351028, %v506
        %v513 = vor.u32 %v511, %v512
        %v514 = vshll.u32 2131351028, %v505
        %v515 = vshrl.u32 2102212464, %v506
        %v516 = vor.u32 %v514, %v515
        %v517 = vshll.u32 2102212464, %v505
        %v518 = vshrl.u32 920167782, %v506
        %v519 = vor.u32 %v517, %v518
        %v520 = vshll.u32 920167782, %v505
        %v521 = vshrl.u32 1326507024, %v506
        %v522 = vor.u32 %v520, %v521
        %vm523 = vcmp.lt.s32.totalorder %v504, 1
        %vm524 = vcmp.lt.s32.totalorder %v504, 2
        %vm525 = vcmp.lt.s32.totalorder %v504, 3
        %vm526 = vcmp.lt.s32.totalorder %v504, 4
        %v527 = vsel %vm523, %v507, %v510
        %v528 = vsel %vm526, %v516, 2102212464
        %v529 = vsel %vm525, %v513, %v528
        %v530 = vsel %vm524, %v527, %v529
        %v531 = vsel %vm523, %v510, %v513
        %v532 = vsel %vm526, %v519, 920167782
        %v533 = vsel %vm525, %v516, %v532
        %v534 = vsel %vm524, %v531, %v533
        %v535 = vsel %vm523, %v513, %v516
        %v536 = vsel %vm526, %v522, 1326507024
        %v537 = vsel %vm525, %v519, %v536
        %v538 = vsel %vm524, %v535, %v537
        %v539 = vshll.u32 %v499, 8
        %v540 = vmul.u32.u64.compose %v539, %v538
        %v541 = vextract.low.u32 %v540
        %v542 = vextract.high.u32 %v540
        %v543 = vmul.u32.u64.compose %v539, %v534
        %v544 = vextract.low.u32 %v543
        %v545 = vextract.high.u32 %v543
        %v546 = vmul.u32 %v539, %v530
        %v547 = vadd.s32 %v542, %v544
        %vm548 = vc.u32 %v542, %v544
        %v549 = vadd.s32 %v545, 1
        %v550 = vsel %vm548, %v549, %v545
        %v551 = vadd.s32 %v546, %v550
        %v552 = vadd.s32 %v551, 536870912
        %v553 = vshrl.u32 %v552, 30
        %v554 = vshll.u32 %v553, 30
        %v555 = vsub.s32 %v551, %v554
        %vm556 = vcmp.lt.s32.totalorder %v555, 0
        %v557 = vsub.s32 0, %v555
        %v558 = vsel %vm556, %v557, %v555
        %v559 = vclz %v558
        %v560 = vsub.s32 %v559, 2
        %vm561 = vcmp.gt.s32.totalorder 0, %v560
        %v562 = vsel %vm561, 0, %v560
        %v563 = vsub.s32 32, %v562
        %v564 = vshll.u32 %v555, %v562
        %v565 = vshrl.u32 %v547, %v563
        %v566 = vor.u32 %v564, %v565
        %v567 = vsub.s32 4294967266, %v562
        %v568 = vadd.s32 %v567, 127
        %v569 = vshll.u32 %v568, 23
        %v570 = vor.u32 4788187, %v569
        %v571 = vand.u32 2147483647, %v570
        %v573 = vcvt.s32.f32 %v566
        %v574 = vmul.f32 %v573, %v571
        %v575 = vxor.u32 %v574, 2147483648
        %v576 = vsel %vm493, %v575, %v574
        %v577 = vsub.s32 4, %v553
        %v578 = vsel %vm493, %v577, %v553
        %v579 = vsel %vm492, %v181, %v576
        %v580 = vsel %vm492, 0, %v578
        %v581 = vcosq.f32.pop %v579
        %v582 = vsinq.f32.pop %v579
        %vm583 = vweird.f32 %v181
        %v584 = vand.u32 %v580, 3
        %vm585 = vcmp.lt.s32.totalorder %v584, 2
        %vm586 = vcmp.eq.s32.totalorder %v584, 0
        %v587 = vxor.u32 %v582, 2147483648
        %v588 = vsel %vm586, %v581, %v587
        %vm589 = vcmp.eq.s32.totalorder %v584, 2
        %v590 = vxor.u32 %v581, 2147483648
        %v591 = vsel %vm589, %v590, %v582
        %v592 = vsel %vm585, %v588, %v591
        %v593 = vsel %vm583, nan, %v592
        %v594 = vand.u32 2147483647, %v172
        %vm595 = vcmp.le.f32.partialorder %v594, 0.7853982
        %vm596 = vcmp.lt.s32.totalorder %v172, 0
        %v597 = vand.u32 %v172, 2139095040
        %v598 = vshrl.u32 %v597, 23
        %v599 = vsub.s32 %v598, 127
        %v600 = vand.u32 2147483647, %v172
        %v601 = vand.u32 %v600, 8388607
        %v602 = vor.u32 %v601, 8388608
        %v603 = vsub.s32 0, %v602
        %v604 = vadd.s32 %v599, 1
        %vm605 = vcmp.gt.s32.totalorder %v604, 0
        %v606 = vsel %vm605, %v604, 0
        %v607 = vshrl.u32 %v606, 5
        %v608 = vand.u32 %v606, 31
        %v609 = vsub.s32 32, %v608
        %v610 = vshrl.u32 683565275, %v609
        %v611 = vshll.u32 683565275, %v608
        %v612 = vshrl.u32 2475754826, %v609
        %v613 = vor.u32 %v611, %v612
        %v614 = vshll.u32 2475754826, %v608
        %v615 = vshrl.u32 2131351028, %v609
        %v616 = vor.u32 %v614, %v615
        %v617 = vshll.u32 2131351028, %v608
        %v618 = vshrl.u32 2102212464, %v609
        %v619 = vor.u32 %v617, %v618
        %v620 = vshll.u32 2102212464, %v608
        %v621 = vshrl.u32 920167782, %v609
        %v622 = vor.u32 %v620, %v621
        %v623 = vshll.u32 920167782, %v608
        %v624 = vshrl.u32 1326507024, %v609
        %v625 = vor.u32 %v623, %v624
        %vm626 = vcmp.lt.s32.totalorder %v607, 1
        %vm627 = vcmp.lt.s32.totalorder %v607, 2
        %vm628 = vcmp.lt.s32.totalorder %v607, 3
        %vm629 = vcmp.lt.s32.totalorder %v607, 4
        %v630 = vsel %vm626, %v610, %v613
        %v631 = vsel %vm629, %v619, 2102212464
        %v632 = vsel %vm628, %v616, %v631
        %v633 = vsel %vm627, %v630, %v632
        %v634 = vsel %vm626, %v613, %v616
        %v635 = vsel %vm629, %v622, 920167782
        %v636 = vsel %vm628, %v619, %v635
        %v637 = vsel %vm627, %v634, %v636
        %v638 = vsel %vm626, %v616, %v619
        %v639 = vsel %vm629, %v625, 1326507024
        %v640 = vsel %vm628, %v622, %v639
        %v641 = vsel %vm627, %v638, %v640
        %v642 = vshll.u32 %v602, 8
        %v643 = vmul.u32.u64.compose %v642, %v641
        %v644 = vextract.low.u32 %v643
        %v645 = vextract.high.u32 %v643
        %v646 = vmul.u32.u64.compose %v642, %v637
        %v647 = vextract.low.u32 %v646
        %v648 = vextract.high.u32 %v646
        %v649 = vmul.u32 %v642, %v633
        %v650 = vadd.s32 %v645, %v647
        %vm651 = vc.u32 %v645, %v647
        %v652 = vadd.s32 %v648, 1
        %v653 = vsel %vm651, %v652, %v648
        %v654 = vadd.s32 %v649, %v653
        %v655 = vadd.s32 %v654, 536870912
        %v656 = vshrl.u32 %v655, 30
        %v657 = vshll.u32 %v656, 30
        %v658 = vsub.s32 %v654, %v657
        %vm659 = vcmp.lt.s32.totalorder %v658, 0
        %v660 = vsub.s32 0, %v658
        %v661 = vsel %vm659, %v660, %v658
        %v662 = vclz %v661
        %v663 = vsub.s32 %v662, 2
        %vm664 = vcmp.gt.s32.totalorder 0, %v663
        %v665 = vsel %vm664, 0, %v663
        %v666 = vsub.s32 32, %v665
        %v667 = vshll.u32 %v658, %v665
        %v668 = vshrl.u32 %v650, %v666
        %v669 = vor.u32 %v667, %v668
        %v670 = vsub.s32 4294967266, %v665
        %v671 = vadd.s32 %v670, 127
        %v672 = vshll.u32 %v671, 23
        %v673 = vor.u32 4788187, %v672
        %v674 = vand.u32 2147483647, %v673
        %v676 = vcvt.s32.f32 %v669
        %v677 = vmul.f32 %v676, %v674
        %v678 = vxor.u32 %v677, 2147483648
        %v679 = vsel %vm596, %v678, %v677
        %v680 = vsub.s32 4, %v656
        %v681 = vsel %vm596, %v680, %v656
        %v682 = vsel %vm595, %v172, %v679
        %v683 = vsel %vm595, 0, %v681
        %v684 = vcosq.f32.pop %v682
        %v685 = vsinq.f32.pop %v682
        %vm686 = vweird.f32 %v172
        %v687 = vadd.s32 %v683, 3
        %v688 = vand.u32 %v687, 3
        %vm689 = vcmp.lt.s32.totalorder %v688, 2
        %vm690 = vcmp.eq.s32.totalorder %v688, 0
        %v691 = vxor.u32 %v685, 2147483648
        %v692 = vsel %vm690, %v684, %v691
        %vm693 = vcmp.eq.s32.totalorder %v688, 2
        %v694 = vxor.u32 %v684, 2147483648
        %v695 = vsel %vm693, %v694, %v685
        %v696 = vsel %vm689, %v692, %v695
        %v697 = vsel %vm686, nan, %v696
        %v698 = vand.u32 2147483647, %v175
        %vm699 = vcmp.le.f32.partialorder %v698, 0.7853982
        %vm700 = vcmp.lt.s32.totalorder %v175, 0
        %v701 = vand.u32 %v175, 2139095040
        %v702 = vshrl.u32 %v701, 23
        %v703 = vsub.s32 %v702, 127
        %v704 = vand.u32 2147483647, %v175
        %v705 = vand.u32 %v704, 8388607
        %v706 = vor.u32 %v705, 8388608
        %v707 = vsub.s32 0, %v706
        %v708 = vadd.s32 %v703, 1
        %vm709 = vcmp.gt.s32.totalorder %v708, 0
        %v710 = vsel %vm709, %v708, 0
        %v711 = vshrl.u32 %v710, 5
        %v712 = vand.u32 %v710, 31
        %v713 = vsub.s32 32, %v712
        %v714 = vshrl.u32 683565275, %v713
        %v715 = vshll.u32 683565275, %v712
        %v716 = vshrl.u32 2475754826, %v713
        %v717 = vor.u32 %v715, %v716
        %v718 = vshll.u32 2475754826, %v712
        %v719 = vshrl.u32 2131351028, %v713
        %v720 = vor.u32 %v718, %v719
        %v721 = vshll.u32 2131351028, %v712
        %v722 = vshrl.u32 2102212464, %v713
        %v723 = vor.u32 %v721, %v722
        %v724 = vshll.u32 2102212464, %v712
        %v725 = vshrl.u32 920167782, %v713
        %v726 = vor.u32 %v724, %v725
        %v727 = vshll.u32 920167782, %v712
        %v728 = vshrl.u32 1326507024, %v713
        %v729 = vor.u32 %v727, %v728
        %vm730 = vcmp.lt.s32.totalorder %v711, 1
        %vm731 = vcmp.lt.s32.totalorder %v711, 2
        %vm732 = vcmp.lt.s32.totalorder %v711, 3
        %vm733 = vcmp.lt.s32.totalorder %v711, 4
        %v734 = vsel %vm730, %v714, %v717
        %v735 = vsel %vm733, %v723, 2102212464
        %v736 = vsel %vm732, %v720, %v735
        %v737 = vsel %vm731, %v734, %v736
        %v738 = vsel %vm730, %v717, %v720
        %v739 = vsel %vm733, %v726, 920167782
        %v740 = vsel %vm732, %v723, %v739
        %v741 = vsel %vm731, %v738, %v740
        %v742 = vsel %vm730, %v720, %v723
        %v743 = vsel %vm733, %v729, 1326507024
        %v744 = vsel %vm732, %v726, %v743
        %v745 = vsel %vm731, %v742, %v744
        %v746 = vshll.u32 %v706, 8
        %v747 = vmul.u32.u64.compose %v746, %v745
        %v748 = vextract.low.u32 %v747
        %v749 = vextract.high.u32 %v747
        %v750 = vmul.u32.u64.compose %v746, %v741
        %v751 = vextract.low.u32 %v750
        %v752 = vextract.high.u32 %v750
        %v753 = vmul.u32 %v746, %v737
        %v754 = vadd.s32 %v749, %v751
        %vm755 = vc.u32 %v749, %v751
        %v756 = vadd.s32 %v752, 1
        %v757 = vsel %vm755, %v756, %v752
        %v758 = vadd.s32 %v753, %v757
        %v759 = vadd.s32 %v758, 536870912
        %v760 = vshrl.u32 %v759, 30
        %v761 = vshll.u32 %v760, 30
        %v762 = vsub.s32 %v758, %v761
        %vm763 = vcmp.lt.s32.totalorder %v762, 0
        %v764 = vsub.s32 0, %v762
        %v765 = vsel %vm763, %v764, %v762
        %v766 = vclz %v765
        %v767 = vsub.s32 %v766, 2
        %vm768 = vcmp.gt.s32.totalorder 0, %v767
        %v769 = vsel %vm768, 0, %v767
        %v770 = vsub.s32 32, %v769
        %v771 = vshll.u32 %v762, %v769
        %v772 = vshrl.u32 %v754, %v770
        %v773 = vor.u32 %v771, %v772
        %v774 = vsub.s32 4294967266, %v769
        %v775 = vadd.s32 %v774, 127
        %v776 = vshll.u32 %v775, 23
        %v777 = vor.u32 4788187, %v776
        %v778 = vand.u32 2147483647, %v777
        %v780 = vcvt.s32.f32 %v773
        %v781 = vmul.f32 %v780, %v778
        %v782 = vxor.u32 %v781, 2147483648
        %v783 = vsel %vm700, %v782, %v781
        %v784 = vsub.s32 4, %v760
        %v785 = vsel %vm700, %v784, %v760
        %v786 = vsel %vm699, %v175, %v783
        %v787 = vsel %vm699, 0, %v785
        %v788 = vcosq.f32.pop %v786
        %v789 = vsinq.f32.pop %v786
        %vm790 = vweird.f32 %v175
        %v791 = vadd.s32 %v787, 3
        %v792 = vand.u32 %v791, 3
        %vm793 = vcmp.lt.s32.totalorder %v792, 2
        %vm794 = vcmp.eq.s32.totalorder %v792, 0
        %v795 = vxor.u32 %v789, 2147483648
        %v796 = vsel %vm794, %v788, %v795
        %vm797 = vcmp.eq.s32.totalorder %v792, 2
        %v798 = vxor.u32 %v788, 2147483648
        %v799 = vsel %vm797, %v798, %v789
        %v800 = vsel %vm793, %v796, %v799
        %v801 = vsel %vm790, nan, %v800
        %v802 = vand.u32 2147483647, %v178
        %vm803 = vcmp.le.f32.partialorder %v802, 0.7853982
        %vm804 = vcmp.lt.s32.totalorder %v178, 0
        %v805 = vand.u32 %v178, 2139095040
        %v806 = vshrl.u32 %v805, 23
        %v807 = vsub.s32 %v806, 127
        %v808 = vand.u32 2147483647, %v178
        %v809 = vand.u32 %v808, 8388607
        %v810 = vor.u32 %v809, 8388608
        %v811 = vsub.s32 0, %v810
        %v812 = vadd.s32 %v807, 1
        %vm813 = vcmp.gt.s32.totalorder %v812, 0
        %v814 = vsel %vm813, %v812, 0
        %v815 = vshrl.u32 %v814, 5
        %v816 = vand.u32 %v814, 31
        %v817 = vsub.s32 32, %v816
        %v818 = vshrl.u32 683565275, %v817
        %v819 = vshll.u32 683565275, %v816
        %v820 = vshrl.u32 2475754826, %v817
        %v821 = vor.u32 %v819, %v820
        %v822 = vshll.u32 2475754826, %v816
        %v823 = vshrl.u32 2131351028, %v817
        %v824 = vor.u32 %v822, %v823
        %v825 = vshll.u32 2131351028, %v816
        %v826 = vshrl.u32 2102212464, %v817
        %v827 = vor.u32 %v825, %v826
        %v828 = vshll.u32 2102212464, %v816
        %v829 = vshrl.u32 920167782, %v817
        %v830 = vor.u32 %v828, %v829
        %v831 = vshll.u32 920167782, %v816
        %v832 = vshrl.u32 1326507024, %v817
        %v833 = vor.u32 %v831, %v832
        %vm834 = vcmp.lt.s32.totalorder %v815, 1
        %vm835 = vcmp.lt.s32.totalorder %v815, 2
        %vm836 = vcmp.lt.s32.totalorder %v815, 3
        %vm837 = vcmp.lt.s32.totalorder %v815, 4
        %v838 = vsel %vm834, %v818, %v821
        %v839 = vsel %vm837, %v827, 2102212464
        %v840 = vsel %vm836, %v824, %v839
        %v841 = vsel %vm835, %v838, %v840
        %v842 = vsel %vm834, %v821, %v824
        %v843 = vsel %vm837, %v830, 920167782
        %v844 = vsel %vm836, %v827, %v843
        %v845 = vsel %vm835, %v842, %v844
        %v846 = vsel %vm834, %v824, %v827
        %v847 = vsel %vm837, %v833, 1326507024
        %v848 = vsel %vm836, %v830, %v847
        %v849 = vsel %vm835, %v846, %v848
        %v850 = vshll.u32 %v810, 8
        %v851 = vmul.u32.u64.compose %v850, %v849
        %v852 = vextract.low.u32 %v851
        %v853 = vextract.high.u32 %v851
        %v854 = vmul.u32.u64.compose %v850, %v845
        %v855 = vextract.low.u32 %v854
        %v856 = vextract.high.u32 %v854
        %v857 = vmul.u32 %v850, %v841
        %v858 = vadd.s32 %v853, %v855
        %vm859 = vc.u32 %v853, %v855
        %v860 = vadd.s32 %v856, 1
        %v861 = vsel %vm859, %v860, %v856
        %v862 = vadd.s32 %v857, %v861
        %v863 = vadd.s32 %v862, 536870912
        %v864 = vshrl.u32 %v863, 30
        %v865 = vshll.u32 %v864, 30
        %v866 = vsub.s32 %v862, %v865
        %vm867 = vcmp.lt.s32.totalorder %v866, 0
        %v868 = vsub.s32 0, %v866
        %v869 = vsel %vm867, %v868, %v866
        %v870 = vclz %v869
        %v871 = vsub.s32 %v870, 2
        %vm872 = vcmp.gt.s32.totalorder 0, %v871
        %v873 = vsel %vm872, 0, %v871
        %v874 = vsub.s32 32, %v873
        %v875 = vshll.u32 %v866, %v873
        %v876 = vshrl.u32 %v858, %v874
        %v877 = vor.u32 %v875, %v876
        %v878 = vsub.s32 4294967266, %v873
        %v879 = vadd.s32 %v878, 127
        %v880 = vshll.u32 %v879, 23
        %v881 = vor.u32 4788187, %v880
        %v882 = vand.u32 2147483647, %v881
        %v884 = vcvt.s32.f32 %v877
        %v885 = vmul.f32 %v884, %v882
        %v886 = vxor.u32 %v885, 2147483648
        %v887 = vsel %vm804, %v886, %v885
        %v888 = vsub.s32 4, %v864
        %v889 = vsel %vm804, %v888, %v864
        %v890 = vsel %vm803, %v178, %v887
        %v891 = vsel %vm803, 0, %v889
        %v892 = vcosq.f32.pop %v890
        %v893 = vsinq.f32.pop %v890
        %vm894 = vweird.f32 %v178
        %v895 = vadd.s32 %v891, 3
        %v896 = vand.u32 %v895, 3
        %vm897 = vcmp.lt.s32.totalorder %v896, 2
        %vm898 = vcmp.eq.s32.totalorder %v896, 0
        %v899 = vxor.u32 %v893, 2147483648
        %v900 = vsel %vm898, %v892, %v899
        %vm901 = vcmp.eq.s32.totalorder %v896, 2
        %v902 = vxor.u32 %v892, 2147483648
        %v903 = vsel %vm901, %v902, %v893
        %v904 = vsel %vm897, %v900, %v903
        %v905 = vsel %vm894, nan, %v904
        %v906 = vand.u32 2147483647, %v181
        %vm907 = vcmp.le.f32.partialorder %v906, 0.7853982
        %vm908 = vcmp.lt.s32.totalorder %v181, 0
        %v909 = vand.u32 %v181, 2139095040
        %v910 = vshrl.u32 %v909, 23
        %v911 = vsub.s32 %v910, 127
        %v912 = vand.u32 2147483647, %v181
        %v913 = vand.u32 %v912, 8388607
        %v914 = vor.u32 %v913, 8388608
        %v915 = vsub.s32 0, %v914
        %v916 = vadd.s32 %v911, 1
        %vm917 = vcmp.gt.s32.totalorder %v916, 0
        %v918 = vsel %vm917, %v916, 0
        %v919 = vshrl.u32 %v918, 5
        %v920 = vand.u32 %v918, 31
        %v921 = vsub.s32 32, %v920
        %v922 = vshrl.u32 683565275, %v921
        %v923 = vshll.u32 683565275, %v920
        %v924 = vshrl.u32 2475754826, %v921
        %v925 = vor.u32 %v923, %v924
        %v926 = vshll.u32 2475754826, %v920
        %v927 = vshrl.u32 2131351028, %v921
        %v928 = vor.u32 %v926, %v927
        %v929 = vshll.u32 2131351028, %v920
        %v930 = vshrl.u32 2102212464, %v921
        %v931 = vor.u32 %v929, %v930
        %v932 = vshll.u32 2102212464, %v920
        %v933 = vshrl.u32 920167782, %v921
        %v934 = vor.u32 %v932, %v933
        %v935 = vshll.u32 920167782, %v920
        %v936 = vshrl.u32 1326507024, %v921
        %v937 = vor.u32 %v935, %v936
        %vm938 = vcmp.lt.s32.totalorder %v919, 1
        %vm939 = vcmp.lt.s32.totalorder %v919, 2
        %vm940 = vcmp.lt.s32.totalorder %v919, 3
        %vm941 = vcmp.lt.s32.totalorder %v919, 4
        %v942 = vsel %vm938, %v922, %v925
        %v943 = vsel %vm941, %v931, 2102212464
        %v944 = vsel %vm940, %v928, %v943
        %v945 = vsel %vm939, %v942, %v944
        %v946 = vsel %vm938, %v925, %v928
        %v947 = vsel %vm941, %v934, 920167782
        %v948 = vsel %vm940, %v931, %v947
        %v949 = vsel %vm939, %v946, %v948
        %v950 = vsel %vm938, %v928, %v931
        %v951 = vsel %vm941, %v937, 1326507024
        %v952 = vsel %vm940, %v934, %v951
        %v953 = vsel %vm939, %v950, %v952
        %v954 = vshll.u32 %v914, 8
        %v955 = vmul.u32.u64.compose %v954, %v953
        %v956 = vextract.low.u32 %v955
        %v957 = vextract.high.u32 %v955
        %v958 = vmul.u32.u64.compose %v954, %v949
        %v959 = vextract.low.u32 %v958
        %v960 = vextract.high.u32 %v958
        %v961 = vmul.u32 %v954, %v945
        %v962 = vadd.s32 %v957, %v959
        %vm963 = vc.u32 %v957, %v959
        %v964 = vadd.s32 %v960, 1
        %v965 = vsel %vm963, %v964, %v960
        %v966 = vadd.s32 %v961, %v965
        %v967 = vadd.s32 %v966, 536870912
        %v968 = vshrl.u32 %v967, 30
        %v969 = vshll.u32 %v968, 30
        %v970 = vsub.s32 %v966, %v969
        %vm971 = vcmp.lt.s32.totalorder %v970, 0
        %v972 = vsub.s32 0, %v970
        %v973 = vsel %vm971, %v972, %v970
        %v974 = vclz %v973
        %v975 = vsub.s32 %v974, 2
        %vm976 = vcmp.gt.s32.totalorder 0, %v975
        %v977 = vsel %vm976, 0, %v975
        %v978 = vsub.s32 32, %v977
        %v979 = vshll.u32 %v970, %v977
        %v980 = vshrl.u32 %v962, %v978
        %v981 = vor.u32 %v979, %v980
        %v982 = vsub.s32 4294967266, %v977
        %v983 = vadd.s32 %v982, 127
        %v984 = vshll.u32 %v983, 23
        %v985 = vor.u32 4788187, %v984
        %v986 = vand.u32 2147483647, %v985
        %v988 = vcvt.s32.f32 %v981
        %v989 = vmul.f32 %v988, %v986
        %v990 = vxor.u32 %v989, 2147483648
        %v991 = vsel %vm908, %v990, %v989
        %v992 = vsub.s32 4, %v968
        %v993 = vsel %vm908, %v992, %v968
        %v994 = vsel %vm907, %v181, %v991
        %v995 = vsel %vm907, 0, %v993
        %v996 = vcosq.f32.pop %v994
        %v997 = vsinq.f32.pop %v994
        %vm998 = vweird.f32 %v181
        %v999 = vadd.s32 %v995, 3
        %v1000 = vand.u32 %v999, 3
        %vm1001 = vcmp.lt.s32.totalorder %v1000, 2
        %vm1002 = vcmp.eq.s32.totalorder %v1000, 0
        %v1003 = vxor.u32 %v997, 2147483648
        %v1004 = vsel %vm1002, %v996, %v1003
        %vm1005 = vcmp.eq.s32.totalorder %v1000, 2
        %v1006 = vxor.u32 %v996, 2147483648
        %v1007 = vsel %vm1005, %v1006, %v997
        %v1008 = vsel %vm1001, %v1004, %v1007
        %v1009 = vsel %vm998, nan, %v1008
        %v1010 = vmul.f32 %v284, %v387
        %v1011 = vmul.f32 %v697, %v801
        %v1012 = vadd.f32 %v1010, %v1011
        %v1013 = vmul.f32 %v284, %v490
        %v1014 = vmul.f32 %v697, %v905
        %v1015 = vadd.f32 %v1013, %v1014
        %v1016 = vmul.f32 %v284, %v593
        %v1017 = vmul.f32 %v697, %v1009
        %v1018 = vadd.f32 %v1016, %v1017
        %v1019 = vmul.f32 %v387, %v490
        %v1020 = vmul.f32 %v801, %v905
        %v1021 = vadd.f32 %v1019, %v1020
        %v1022 = vmul.f32 %v387, %v593
        %v1023 = vmul.f32 %v801, %v1009
        %v1024 = vadd.f32 %v1022, %v1023
        %v1025 = vmul.f32 %v490, %v593
        %v1026 = vmul.f32 %v905, %v1009
        %v1027 = vadd.f32 %v1025, %v1026
        %v1029 = vlaneseq
        %v1030 = vshrl.u32 %v1029, 7
        %v1031 = vsub.s32 0, %v1030
        %v1032 = vrot.slane %v1012, %v1031
        %v1033 = vlaneseq
        %v1034 = vshrl.u32 %v1033, 7
        %v1035 = vsub.s32 1, %v1034
        %v1036 = vrot.slane %v1012, %v1035
        %v1040 = vlaneseq
        %v1041 = vshrl.u32 %v1040, 7
        %v1042 = vsub.s32 0, %v1041
        %v1043 = vrot.slane %v1015, %v1042
        %v1044 = vlaneseq
        %v1045 = vshrl.u32 %v1044, 7
        %v1046 = vsub.s32 1, %v1045
        %v1047 = vrot.slane %v1015, %v1046
        %v1051 = vlaneseq
        %v1052 = vshrl.u32 %v1051, 7
        %v1053 = vsub.s32 0, %v1052
        %v1054 = vrot.slane %v1018, %v1053
        %v1055 = vlaneseq
        %v1056 = vshrl.u32 %v1055, 7
        %v1057 = vsub.s32 1, %v1056
        %v1058 = vrot.slane %v1018, %v1057
        %v1062 = vlaneseq
        %v1063 = vshrl.u32 %v1062, 7
        %v1064 = vsub.s32 0, %v1063
        %v1065 = vrot.slane %v1021, %v1064
        %v1066 = vlaneseq
        %v1067 = vshrl.u32 %v1066, 7
        %v1068 = vsub.s32 1, %v1067
        %v1069 = vrot.slane %v1021, %v1068
        %v1073 = vlaneseq
        %v1074 = vshrl.u32 %v1073, 7
        %v1075 = vsub.s32 0, %v1074
        %v1076 = vrot.slane %v1024, %v1075
        %v1077 = vlaneseq
        %v1078 = vshrl.u32 %v1077, 7
        %v1079 = vsub.s32 1, %v1078
        %v1080 = vrot.slane %v1024, %v1079
        %v1084 = vlaneseq
        %v1085 = vshrl.u32 %v1084, 7
        %v1086 = vsub.s32 0, %v1085
        %v1087 = vrot.slane %v1027, %v1086
        %v1088 = vlaneseq
        %v1089 = vshrl.u32 %v1088, 7
        %v1090 = vsub.s32 1, %v1089
        %v1091 = vrot.slane %v1027, %v1090
        %vm1094 = vcmask 1040384
        %v1095 = vsel %vm1094, 1.0, %v1032
        %v1096 = vsel %vm1094, 1.0, %v1036
        %vm1097 = vcmask 1041408
        %v1098 = vsel %vm1097, %v1095, %v1043
        %v1099 = vsel %vm1097, %v1096, %v1047
        %vm1100 = vcmask 1042432
        %v1101 = vsel %vm1100, %v1098, %v1054
        %v1102 = vsel %vm1100, %v1099, %v1058
        %vm1103 = vcmask 1043456
        %v1104 = vsel %vm1103, %v1101, %v1032
        %v1105 = vsel %vm1103, %v1102, %v1036
        %vm1106 = vcmask 1044480
        %v1107 = vsel %vm1106, %v1104, 1.0
        %v1108 = vsel %vm1106, %v1105, 1.0
        %vm1109 = vcmask 1045504
        %v1110 = vsel %vm1109, %v1107, %v1065
        %v1111 = vsel %vm1109, %v1108, %v1069
        %vm1112 = vcmask 1046528
        %v1113 = vsel %vm1112, %v1110, %v1076
        %v1114 = vsel %vm1112, %v1111, %v1080
        %v1115 = vsel %vm1094, %v1043, %v1065
        %v1116 = vsel %vm1094, %v1047, %v1069
        %v1117 = vsel %vm1097, %v1115, 1.0
        %v1118 = vsel %vm1097, %v1116, 1.0
        %v1119 = vsel %vm1100, %v1117, %v1087
        %v1120 = vsel %vm1100, %v1118, %v1091
        %v1121 = vsel %vm1103, %v1119, %v1054
        %v1122 = vsel %vm1103, %v1120, %v1058
        %v1123 = vsel %vm1106, %v1121, %v1076
        %v1124 = vsel %vm1106, %v1122, %v1080
        %v1125 = vsel %vm1109, %v1123, %v1087
        %v1126 = vsel %vm1109, %v1124, %v1091
        %v1127 = vsel %vm1112, %v1125, 1.0
        %v1128 = vsel %vm1112, %v1126, 1.0
        %v1129 = vld [vmem:[%s1] sm:$0xff]
        %v1130 = vld [vmem:[%s1 + $0x8] sm:$0xff]
        %1132 = vset.pattern.permute.xlu0 0
        %1133 = vperm.xlu0 %1132, %v1129
        %v1134 = vpop.permute.xlu0 %1133
        %1137 = vset.pattern.permute.xlu0 0
        %1138 = vperm.xlu0 %1137, %v1130
        %v1139 = vpop.permute.xlu0 %1138
        %v1141 = vmul.f32 %v1134, %v1113
        %v1142 = vmul.f32 %v1134, %v1114
        %v1143 = vmul.f32 %v1139, %v1127
        %v1144 = vmul.f32 %v1139, %v1128
        %v1145 = vld [vmem:[%s2] sm:$0xff]
        %v1146 = vld [vmem:[%s2 + $0x8] sm:$0xff]
        %1148 = vset.pattern.permute.xlu0 0
        %1149 = vperm.xlu0 %1148, %v1145
        %v1150 = vpop.permute.xlu0 %1149
        %1153 = vset.pattern.permute.xlu0 0
        %1154 = vperm.xlu0 %1153, %v1146
        %v1155 = vpop.permute.xlu0 %1154
        %v1157 = vadd.f32 %v1141, %v1150
        %v1158 = vadd.f32 %v1142, %v1150
        %v1159 = vadd.f32 %v1143, %v1155
        %v1160 = vadd.f32 %v1144, %v1155
        %1161 = vst [vmem:[%s164] sm:$0xff] %v1157
        %1162 = vst [vmem:[%s164 + $0x8] sm:$0xff] %v1158
        %1163 = vst [vmem:[%s164 + $0x10] sm:$0xff] %v1159
        %1164 = vst [vmem:[%s164 + $0x18] sm:$0xff] %v1160
        %s1165 = sand.u32 %s93, 1
        %s1166 = scalar_lea.sflag [#allocation3], %s1165
        %s1167 = sand.u32 %s93, 1
        %s1168 = smul.addr %s1167, 32
        %s1169 = scalar_lea.vmem [#allocation2], %s1168
        // Predicated region
        $region33: #{tpu_custom_call.1} parent=31 // pred_check
          %p1170 = pneg %p103
        $region34: #{tpu_custom_call.1} parent=31 // pred_check_branch
          %1172 = sbr.rel (%p1170) target = $region36
        $region35: #{tpu_custom_call.1} parent=31 // pred_region
          %s1173 = smul.u32 2, %s17
          %s1175 = ssub.s32 512, 512
          %1176 = vsyncadd %s1166, %s1175
          %s1177 = smul.addr %s1173, 128
          %s1178 = scalar_lea.hbm %s3, %s1177
          %s1179 = sshll.u32 %s1169, 4
          %s1180 = int_to_ptr.vmem [resolvable:$true] %s1179
          %1185 = dma.vmem_to_hbm [thread:$0]  %s1180, 512, %s1178, %s1166, 256, 512, 16
        $region36: #{tpu_custom_call.1} parent=31 // pred_fallthru
          _
      $region32: #{tpu_custom_call.1} parent=5 // pred_fallthru
        _
      %p1186 = scmp.le.s32.totalorder 2, %s12
      // Predicated region
      $region37: #{tpu_custom_call.1} parent=5 // pred_check
        %p1187 = pneg %p1186
      $region38: #{tpu_custom_call.1} parent=5 // pred_check_branch
        %1189 = sbr.rel (%p1187) target = $region40
      $region39: #{tpu_custom_call.1} parent=5 // pred_region
        %s1190 = ssub.s32 %s12, 2
        // Predicated region
        $region41: #{tpu_custom_call.1} parent=39 // pred_check
          %p1191 = pneg %p109
        $region42: #{tpu_custom_call.1} parent=39 // pred_check_branch
          %1193 = sbr.rel (%p1191) target = $region44
        $region43: #{tpu_custom_call.1} parent=39 // pred_region
          %s1194 = sand.u32 %s94, 1
          %s1195 = scalar_lea.sflag [#allocation3], %s1194
          %s1196 = sand.u32 %s94, 1
          %s1197 = smul.addr %s1196, 32
          %s1198 = scalar_lea.vmem [#allocation2], %s1197
          %1199 = dma.done %s1195, 512
        $region44: #{tpu_custom_call.1} parent=39 // pred_fallthru
          _
      $region40: #{tpu_custom_call.1} parent=5 // pred_fallthru
        _
    $region6: #{tpu_custom_call.1} parent=1 // loop_footer
      %s16 = sadd.s32 1, %s12
    $region7: #{tpu_custom_call.1} parent=1 // loop_footer_branch
      %11 = sbr.rel target = $region3
    $region8: #{tpu_custom_call.1} parent=1 // loop_exit
      _
    %1200 = vsyncpa [#allocation3], 1
    %s1201 = scalar_lea.sflag [#allocation3], 1
    %1202 = vsyncpa %s1201, 1

</llo_original>
